<compile_context>
chip_gen: v7x
topology: tpu7x:2x2x1
jax: 0.10.0
libtpu: 0.0.40
codegen_flags: <defaults>
</compile_context>

<pallas_src>
import functools

import jax
import jax.numpy as jnp
from jax import lax
from jax.experimental import pallas as pl
from jax.experimental.pallas import tpu as pltpu


# ----------------------------------------------------------------------------
# Helpers.
# ----------------------------------------------------------------------------
def _vmem_limit_bytes(nominal_bytes):
    """Scoped-VMEM budget: nominal need x2 (double buffering + (8,128) tile
    padding headroom) + 2 MiB, floored at 32 MiB, capped at 96 MiB.
    On v7x (64 MiB physical) shrink time_chunk/batch_block if the nominal
    need approaches the cap."""
    return int(min(max(2 * nominal_bytes + (2 << 20), 32 << 20), 96 << 20))


def prepare_params(w_ih, w_hh, b_ih, b_hh, compute_dtype=jnp.float32):
    """One-time parameter preparation (gate-major, lane-dense layouts).

    torch.nn.GRUCell stores weights as (3H, Din) with gate order (r, z, n).
      wx  : (3, Din, H)  per-gate input weights  = w_ih[g*H:(g+1)*H].T
      wh  : (3, H,   H)  per-gate hidden weights = w_hh[g*H:(g+1)*H].T
      bx  : (3, 1,   H)  [b_ih_r + b_hh_r, b_ih_z + b_hh_z, b_ih_n]
      bhn : (1, H)       b_hh_n (must stay inside the r * (gh_n + bhn) term)

    compute_dtype: storage dtype of the big weight stacks and the gi stream.
      Pass jnp.bfloat16 on v6e/v7x (halves VMEM residency + HBM bytes;
      accumulation stays f32).  Default f32 keeps parity with the reference.
    """
    g3, din = w_ih.shape
    h = g3 // 3
    wx = jnp.transpose(w_ih.reshape(3, h, din), (0, 2, 1)).astype(compute_dtype)
    wh = jnp.transpose(w_hh.reshape(3, h, h), (0, 2, 1)).astype(compute_dtype)
    bih = b_ih.reshape(3, 1, h).astype(jnp.float32)
    bhh = b_hh.reshape(3, 1, h).astype(jnp.float32)
    bx = jnp.concatenate([bih[:2] + bhh[:2], bih[2:3]], axis=0)      # (3,1,H)
    bhn = bhh[2].reshape(1, h)                                        # (1,H)
    return wx, wh, bx, bhn


# ----------------------------------------------------------------------------
# Stage 1: gi pre-pass -- one batched matmul per gate over all T*B rows.
# ----------------------------------------------------------------------------
def _gi_prepass_kernel(xs_ref, wx_ref, bx_ref, gr_ref, gz_ref, gn_ref):
    xs = xs_ref[...]                                   # (RB, Din)
    for g, out_ref in enumerate((gr_ref, gz_ref, gn_ref)):
        acc = jnp.dot(xs, wx_ref[g], preferred_element_type=jnp.float32)
        out_ref[...] = (acc + bx_ref[g]).astype(out_ref.dtype)


# ----------------------------------------------------------------------------
# Stage 2: fused recurrence.  grid = (B//TB, T//TC); h carried in VMEM scratch.
# Only the small h @ Wh matmuls, gate nonlinearities and the copy/reset
# selects remain on the serial critical path.
# ----------------------------------------------------------------------------
def _hmgru_seq_kernel(tc, gr_ref, gz_ref, gn_ref, dc_ref, h0_ref, wh_ref,
                      bhn_ref, hseq_ref, h_carry):
    c = pl.program_id(1)                               # time-chunk index

    @pl.when(c == 0)
    def _init():                                       # new batch block
        h_carry[...] = h0_ref[...]

    bhn = bhn_ref[...]                                 # hoisted loads
    wh_r = wh_ref[0]
    wh_z = wh_ref[1]
    wh_n = wh_ref[2]

    def step(i, h):
        dc = dc_ref[i]                                 # (TB, 2) = [1-d, copy]
        h_in = h * dc[:, 0:1]                          # reset_after_flush
        hw = h_in.astype(wh_r.dtype)
        gh_r = jnp.dot(hw, wh_r, preferred_element_type=jnp.float32)
        gh_z = jnp.dot(hw, wh_z, preferred_element_type=jnp.float32)
        gh_n = jnp.dot(hw, wh_n, preferred_element_type=jnp.float32)
        r = jax.nn.sigmoid(gr_ref[i].astype(jnp.float32) + gh_r)
        z = jax.nn.sigmoid(gz_ref[i].astype(jnp.float32) + gh_z)
        n = jnp.tanh(gn_ref[i].astype(jnp.float32) + r * (gh_n + bhn))
        h_new = (1.0 - z) * n + z * h_in
        h_out = jnp.where(dc[:, 1:2] > 0.5, h_in, h_new)   # copy-gate select
        hseq_ref[i] = h_out
        return h_out

    # Short fixed trip count -> fully unrolled for LLO scheduler visibility.
    h_carry[...] = lax.fori_loop(0, tc, step, h_carry[...], unroll=True)


def hmgru_sequence(x_seq, h0, hb_seq, ht_seq, db_seq, d_seq, params,
                   *, time_chunk=8, batch_block=None):
    """Run HMGRUCellV2 over a whole sequence.

    x_seq: (T,B,Dx)  hb_seq: (T,B,Hb)  ht_seq: (T,B,Ht)
    db_seq/d_seq: (T,B,1)  h0: (B,H).  Returns h_seq: (T,B,H).
    """
    wx, wh, bx, bhn = params
    T, B, _ = x_seq.shape
    H = h0.shape[1]
    cdt = wx.dtype
    isz = jnp.dtype(cdt).itemsize

    TB = B if batch_block is None else int(batch_block)
    if B % TB != 0 or (TB != B and TB % 8 != 0):
        raise ValueError("batch_block must divide B and be a multiple of 8")
    TC = int(min(time_chunk, T))
    Tp = ((T + TC - 1) // TC) * TC
    nb, nc = B // TB, Tp // TC

    # One batched pass over the inputs (XLA): boundary scaling + concat, plus
    # the per-step [1-d, copy] row scalars.  Nothing per-step remains outside
    # the kernels.
    xs = jnp.concatenate(
        [x_seq * db_seq, hb_seq * db_seq, ht_seq * d_seq], axis=-1)   # (T,B,Din)
    Din = xs.shape[-1]
    dc = jnp.concatenate(
        [1.0 - d_seq, ((db_seq + d_seq) == 0.0).astype(jnp.float32)],
        axis=-1).astype(jnp.float32)                                   # (T,B,2)

    if Tp != T:   # pad the tail with pure "copy" steps, sliced off at the end
        xs = jnp.concatenate([xs, jnp.zeros((Tp - T, B, Din), xs.dtype)], axis=0)
        dc = jnp.concatenate([dc, jnp.ones((Tp - T, B, 2), jnp.float32)], axis=0)

    # ---------------- Stage 1: batched gi pre-pass ----------------
    R = Tp * B
    RB = TC * B                         # rows per block (multiple of 8, | R)
    xs2 = xs.reshape(R, Din).astype(cdt)

    pre_vmem = _vmem_limit_bytes(
        2 * RB * Din * isz + 2 * 3 * Din * H * isz + 6 * RB * H * isz)

    gi_r, gi_z, gi_n = pl.pallas_call(
        _gi_prepass_kernel,
        out_shape=tuple(jax.ShapeDtypeStruct((R, H), cdt) for _ in range(3)),
        grid_spec=pltpu.PrefetchScalarGridSpec(
            num_scalar_prefetch=0,
            grid=(R // RB,),
            in_specs=[
                pl.BlockSpec((RB, Din), lambda r: (r, 0)),        # row stream
                pl.BlockSpec((3, Din, H), lambda r: (0, 0, 0)),   # resident Wx
                pl.BlockSpec((3, 1, H), lambda r: (0, 0, 0)),     # resident bx
            ],
            out_specs=tuple(pl.BlockSpec((RB, H), lambda r: (r, 0))
                            for _ in range(3)),
        ),
        compiler_params=pltpu.CompilerParams(
            dimension_semantics=("parallel",),
            vmem_limit_bytes=pre_vmem),
    )(xs2, wx, bx)

    # Leading-dim splits are free (no transpose / data movement).
    gi_r = gi_r.reshape(Tp, B, H)
    gi_z = gi_z.reshape(Tp, B, H)
    gi_n = gi_n.reshape(Tp, B, H)

    # ---------------- Stage 2: fused recurrence ----------------
    seq_vmem = _vmem_limit_bytes(
        3 * 2 * TC * TB * H * isz          # gi_r/z/n streams, double buffered
        + 2 * TC * max(TB, 8) * 128 * 4    # dc (lane-padded)
        + 2 * TB * H * 4                   # h0 block
        + 2 * 3 * H * H * isz              # resident Wh
        + 2 * TC * TB * H * 4              # output block
        + TB * H * 4)                      # carry scratch

    kernel = functools.partial(_hmgru_seq_kernel, TC)
    h_seq = pl.pallas_call(
        kernel,
        out_shape=jax.ShapeDtypeStruct((Tp, B, H), jnp.float32),
        grid_spec=pltpu.PrefetchScalarGridSpec(
            num_scalar_prefetch=0,
            grid=(nb, nc),
            in_specs=[
                pl.BlockSpec((TC, TB, H), lambda b, c: (c, b, 0)),  # gi_r
                pl.BlockSpec((TC, TB, H), lambda b, c: (c, b, 0)),  # gi_z
                pl.BlockSpec((TC, TB, H), lambda b, c: (c, b, 0)),  # gi_n
                pl.BlockSpec((TC, TB, 2), lambda b, c: (c, b, 0)),  # [1-d,copy]
                pl.BlockSpec((TB, H), lambda b, c: (b, 0)),         # h0 block
                pl.BlockSpec((3, H, H), lambda b, c: (0, 0, 0)),    # resident Wh
                pl.BlockSpec((1, H), lambda b, c: (0, 0)),          # resident bhn
            ],
            out_specs=pl.BlockSpec((TC, TB, H), lambda b, c: (c, b, 0)),
            scratch_shapes=[pltpu.VMEM((TB, H), jnp.float32)],      # h carry
        ),
        compiler_params=pltpu.CompilerParams(
            # Batch blocks are independent -> "parallel" (v7x megacore split);
            # time is the sequential carry -> "arbitrary".
            dimension_semantics=("parallel", "arbitrary"),
            vmem_limit_bytes=seq_vmem),
        # If the gi stream DMA is ever exposed, add
        #   pipeline_mode=pl.Buffered(3)
        # on the three gi BlockSpecs above.
    )(gi_r, gi_z, gi_n, dc, h0.astype(jnp.float32), wh, bhn)

    return h_seq[:T]


# ----------------------------------------------------------------------------
# Single-step kernel (exactly HMGRUCellV2.forward).  Do NOT drive a time loop
# through this -- weights are re-DMA'd from HBM on every call; use
# hmgru_sequence for sequences.
# ----------------------------------------------------------------------------
def _hmgru_cell_kernel(xs_ref, h_ref, dc_ref, wx_ref, bx_ref, wh_ref, bhn_ref,
                       out_ref):
    dc = dc_ref[...]                                   # (B, 2) = [1-d, copy]
    h_in = h_ref[...] * dc[:, 0:1]                     # reset_after_flush
    xs = xs_ref[...]
    hw = h_in.astype(wh_ref.dtype)
    gi = [jnp.dot(xs, wx_ref[g], preferred_element_type=jnp.float32) + bx_ref[g]
          for g in range(3)]
    gh = [jnp.dot(hw, wh_ref[g], preferred_element_type=jnp.float32)
          for g in range(3)]
    r = jax.nn.sigmoid(gi[0] + gh[0])
    z = jax.nn.sigmoid(gi[1] + gh[1])
    n = jnp.tanh(gi[2] + r * (gh[2] + bhn_ref[...]))
    h_new = (1.0 - z) * n + z * h_in
    out_ref[...] = jnp.where(dc[:, 1:2] > 0.5, h_in, h_new)


def hmgru_cell(x, h, h_bottom, h_top, d_bottom, d, params):
    """Pallas HMGRUCellV2 single-step forward.  Returns (h_out, None, None)."""
    wx, wh, bx, bhn = params
    B = x.shape[0]
    H = h.shape[1]
    Din = wx.shape[1]
    isz = jnp.dtype(wx.dtype).itemsize

    xs = jnp.concatenate(
        [x * d_bottom, h_bottom * d_bottom, h_top * d], axis=-1).astype(wx.dtype)
    dc = jnp.concatenate(
        [1.0 - d, ((d_bottom + d) == 0.0).astype(jnp.float32)], axis=-1)

    vmem = pl.BlockSpec(memory_space=pltpu.MemorySpace.VMEM)
    nominal = (B * Din * isz + 3 * B * H * 4 + 3 * Din * H * isz
               + 3 * H * H * isz + max(B, 8) * 128 * 4)
    h_out = pl.pallas_call(
        _hmgru_cell_kernel,
        out_shape=jax.ShapeDtypeStruct((B, H), jnp.float32),
        in_specs=[vmem] * 7,
        out_specs=vmem,
        compiler_params=pltpu.CompilerParams(
            vmem_limit_bytes=_vmem_limit_bytes(nominal)),
    )(xs, h.astype(jnp.float32), dc, wx, bx, wh, bhn)
    return h_out, None, None


# ----------------------------------------------------------------------------
# Pure-JAX reference mirroring the PyTorch module (for verification only).
# ----------------------------------------------------------------------------
def _gru_cell_ref(x, h, w_ih, w_hh, b_ih, b_hh):
    H = h.shape[1]
    gi = x @ w_ih.T + b_ih
    gh = h @ w_hh.T + b_hh
    r = jax.nn.sigmoid(gi[:, :H] + gh[:, :H])
    z = jax.nn.sigmoid(gi[:, H:2 * H] + gh[:, H:2 * H])
    n = jnp.tanh(gi[:, 2 * H:] + r * gh[:, 2 * H:])
    return (1.0 - z) * n + z * h


def _hmgru_cell_ref(x, h, h_bottom, h_top, d_bottom, d,
                    w_ih, w_hh, b_ih, b_hh):
    xs = jnp.concatenate(
        [x * d_bottom, h_bottom * d_bottom, h_top * d], axis=-1)
    h_in = h * (1.0 - d)
    h_new = _gru_cell_ref(xs, h_in, w_ih, w_hh, b_ih, b_hh)
    copy = ((d_bottom + d) == 0.0).astype(x.dtype)
    return copy * h_in + (1.0 - copy) * h_new


if __name__ == "__main__":
    batch = 16
    input_size = 16
    bottom_size = 8
    top_size = 8
    hidden = 32
    seq = 11                     # not a multiple of time_chunk: exercises padding
    din = input_size + bottom_size + top_size

    key = jax.random.PRNGKey(0)
    keys = jax.random.split(key, 16)

    # PyTorch GRUCell default init: U(-k, k), k = 1/sqrt(H).
    kinit = 1.0 / jnp.sqrt(hidden)
    w_ih = jax.random.uniform(keys[0], (3 * hidden, din), jnp.float32, -kinit, kinit)
    w_hh = jax.random.uniform(keys[1], (3 * hidden, hidden), jnp.float32, -kinit, kinit)
    b_ih = jax.random.uniform(keys[2], (3 * hidden,), jnp.float32, -kinit, kinit)
    b_hh = jax.random.uniform(keys[3], (3 * hidden,), jnp.float32, -kinit, kinit)

    # f32 keeps parity with the reference; use compute_dtype=jnp.bfloat16 on
    # v6e/v7x at production sizes.
    params = prepare_params(w_ih, w_hh, b_ih, b_hh)

    # ---- single-step check (the nn.Module forward) ----
    x = jax.random.normal(keys[4], (batch, input_size), jnp.float32)
    h = jax.random.normal(keys[5], (batch, hidden), jnp.float32)
    h_bottom = jax.random.normal(keys[6], (batch, bottom_size), jnp.float32)
    h_top = jax.random.normal(keys[7], (batch, top_size), jnp.float32)
    d_bottom = jax.random.bernoulli(keys[8], 0.5, (batch, 1)).astype(jnp.float32)
    d = jax.random.bernoulli(keys[9], 0.5, (batch, 1)).astype(jnp.float32)

    h_out, _, _ = hmgru_cell(x, h, h_bottom, h_top, d_bottom, d, params)
    jax.block_until_ready(h_out)
    h_ref = _hmgru_cell_ref(x, h, h_bottom, h_top, d_bottom, d,
                            w_ih, w_hh, b_ih, b_hh)
    err = float(jnp.max(jnp.abs(h_out - h_ref)))
    assert jnp.allclose(h_out, h_ref, atol=1e-3, rtol=1e-3), err

    # ---- fused-sequence check (hoisted gi pre-pass + chunked recurrence) ----
    x_seq = jax.random.normal(keys[10], (seq, batch, input_size), jnp.float32)
    hb_seq = jax.random.normal(keys[11], (seq, batch, bottom_size), jnp.float32)
    ht_seq = jax.random.normal(keys[12], (seq, batch, top_size), jnp.float32)
    db_seq = jax.random.bernoulli(
        keys[13], 0.5, (seq, batch, 1)).astype(jnp.float32)
    d_seq = jax.random.bernoulli(
        keys[14], 0.5, (seq, batch, 1)).astype(jnp.float32)
    h0 = jax.random.normal(keys[15], (batch, hidden), jnp.float32)

    h_seq = hmgru_sequence(x_seq, h0, hb_seq, ht_seq, db_seq, d_seq, params,
                           time_chunk=4, batch_block=8)
    jax.block_until_ready(h_seq)

    h_t = h0
    ref_steps = []
    for t in range(seq):
        h_t = _hmgru_cell_ref(x_seq[t], h_t, hb_seq[t], ht_seq[t],
                              db_seq[t], d_seq[t], w_ih, w_hh, b_ih, b_hh)
        ref_steps.append(h_t)
    h_ref_seq = jnp.stack(ref_steps, axis=0)
    err = float(jnp.max(jnp.abs(h_seq - h_ref_seq)))
    assert jnp.allclose(h_seq, h_ref_seq, atol=2e-3, rtol=2e-3), err

    print("KERNEL_OK")
</pallas_src>

<mosaic_0001>
module attributes {stable_mosaic.version = 11 : i64} {
  func.func @_hmgru_cell_kernel(%arg0: memref<16x32xf32, #tpu.memory_space<vmem>>, %arg1: memref<16x32xf32, #tpu.memory_space<vmem>>, %arg2: memref<16x2xf32, #tpu.memory_space<vmem>>, %arg3: memref<3x32x32xf32, #tpu.memory_space<vmem>>, %arg4: memref<3x1x32xf32, #tpu.memory_space<vmem>>, %arg5: memref<3x32x32xf32, #tpu.memory_space<vmem>>, %arg6: memref<1x32xf32, #tpu.memory_space<vmem>>, %arg7: memref<16x32xf32, #tpu.memory_space<vmem>>) attributes {dimension_semantics = [], scalar_prefetch = 0 : i64, scratch_operands = 0 : i64, tpu.core_type = #tpu.core_type<tc>} {
    %c0 = arith.constant 0 : index
    %c0_0 = arith.constant 0 : index
    %0 = vector.load %arg2[%c0, %c0_0] : memref<16x2xf32, #tpu.memory_space<vmem>>, vector<16x2xf32>
    %c0_1 = arith.constant 0 : index
    %c0_2 = arith.constant 0 : index
    %1 = vector.load %arg1[%c0_1, %c0_2] : memref<16x32xf32, #tpu.memory_space<vmem>>, vector<16x32xf32>
    %2 = vector.extract_strided_slice %0 {offsets = [0, 0], sizes = [16, 1], strides = [1, 1]} : vector<16x2xf32> to vector<16x1xf32>
    %3 = vector.broadcast %2 : vector<16x1xf32> to vector<16x32xf32>
    %4 = arith.mulf %1, %3 : vector<16x32xf32>
    %c0_3 = arith.constant 0 : index
    %c0_4 = arith.constant 0 : index
    %5 = vector.load %arg0[%c0_3, %c0_4] : memref<16x32xf32, #tpu.memory_space<vmem>>, vector<16x32xf32>
    %c0_5 = arith.constant 0 : index
    %c0_6 = arith.constant 0 : index
    %c0_7 = arith.constant 0 : index
    %6 = vector.load %arg3[%c0_5, %c0_6, %c0_7] : memref<3x32x32xf32, #tpu.memory_space<vmem>>, vector<1x32x32xf32>
    %7 = vector.shape_cast %6 : vector<1x32x32xf32> to vector<32x32xf32>
    %cst = arith.constant dense<0.000000e+00> : vector<16x32xf32>
    %8 = tpu.matmul %5, %7, %cst {dimension_numbers = #tpu.dot_dimension_numbers<[1], [0], [0], [1], [0, 0, 1, 1], [], []>} : vector<16x32xf32>, vector<32x32xf32>, vector<16x32xf32> -> vector<16x32xf32>
    %c0_8 = arith.constant 0 : index
    %c0_9 = arith.constant 0 : index
    %c0_10 = arith.constant 0 : index
    %9 = vector.load %arg4[%c0_8, %c0_9, %c0_10] : memref<3x1x32xf32, #tpu.memory_space<vmem>>, vector<1x1x32xf32>
    %10 = vector.shape_cast %9 : vector<1x1x32xf32> to vector<1x32xf32>
    %11 = vector.broadcast %10 : vector<1x32xf32> to vector<16x32xf32>
    %12 = arith.addf %8, %11 : vector<16x32xf32>
    %c1 = arith.constant 1 : index
    %c0_11 = arith.constant 0 : index
    %c0_12 = arith.constant 0 : index
    %13 = vector.load %arg3[%c1, %c0_11, %c0_12] : memref<3x32x32xf32, #tpu.memory_space<vmem>>, vector<1x32x32xf32>
    %14 = vector.shape_cast %13 : vector<1x32x32xf32> to vector<32x32xf32>
    %cst_13 = arith.constant dense<0.000000e+00> : vector<16x32xf32>
    %15 = tpu.matmul %5, %14, %cst_13 {dimension_numbers = #tpu.dot_dimension_numbers<[1], [0], [0], [1], [0, 0, 1, 1], [], []>} : vector<16x32xf32>, vector<32x32xf32>, vector<16x32xf32> -> vector<16x32xf32>
    %c1_14 = arith.constant 1 : index
    %c0_15 = arith.constant 0 : index
    %c0_16 = arith.constant 0 : index
    %16 = vector.load %arg4[%c1_14, %c0_15, %c0_16] : memref<3x1x32xf32, #tpu.memory_space<vmem>>, vector<1x1x32xf32>
    %17 = vector.shape_cast %16 : vector<1x1x32xf32> to vector<1x32xf32>
    %18 = vector.broadcast %17 : vector<1x32xf32> to vector<16x32xf32>
    %19 = arith.addf %15, %18 : vector<16x32xf32>
    %c2 = arith.constant 2 : index
    %c0_17 = arith.constant 0 : index
    %c0_18 = arith.constant 0 : index
    %20 = vector.load %arg3[%c2, %c0_17, %c0_18] : memref<3x32x32xf32, #tpu.memory_space<vmem>>, vector<1x32x32xf32>
    %21 = vector.shape_cast %20 : vector<1x32x32xf32> to vector<32x32xf32>
    %cst_19 = arith.constant dense<0.000000e+00> : vector<16x32xf32>
    %22 = tpu.matmul %5, %21, %cst_19 {dimension_numbers = #tpu.dot_dimension_numbers<[1], [0], [0], [1], [0, 0, 1, 1], [], []>} : vector<16x32xf32>, vector<32x32xf32>, vector<16x32xf32> -> vector<16x32xf32>
    %c2_20 = arith.constant 2 : index
    %c0_21 = arith.constant 0 : index
    %c0_22 = arith.constant 0 : index
    %23 = vector.load %arg4[%c2_20, %c0_21, %c0_22] : memref<3x1x32xf32, #tpu.memory_space<vmem>>, vector<1x1x32xf32>
    %24 = vector.shape_cast %23 : vector<1x1x32xf32> to vector<1x32xf32>
    %25 = vector.broadcast %24 : vector<1x32xf32> to vector<16x32xf32>
    %26 = arith.addf %22, %25 : vector<16x32xf32>
    %c0_23 = arith.constant 0 : index
    %c0_24 = arith.constant 0 : index
    %c0_25 = arith.constant 0 : index
    %27 = vector.load %arg5[%c0_23, %c0_24, %c0_25] : memref<3x32x32xf32, #tpu.memory_space<vmem>>, vector<1x32x32xf32>
    %28 = vector.shape_cast %27 : vector<1x32x32xf32> to vector<32x32xf32>
    %cst_26 = arith.constant dense<0.000000e+00> : vector<16x32xf32>
    %29 = tpu.matmul %4, %28, %cst_26 {dimension_numbers = #tpu.dot_dimension_numbers<[1], [0], [0], [1], [0, 0, 1, 1], [], []>} : vector<16x32xf32>, vector<32x32xf32>, vector<16x32xf32> -> vector<16x32xf32>
    %c1_27 = arith.constant 1 : index
    %c0_28 = arith.constant 0 : index
    %c0_29 = arith.constant 0 : index
    %30 = vector.load %arg5[%c1_27, %c0_28, %c0_29] : memref<3x32x32xf32, #tpu.memory_space<vmem>>, vector<1x32x32xf32>
    %31 = vector.shape_cast %30 : vector<1x32x32xf32> to vector<32x32xf32>
    %cst_30 = arith.constant dense<0.000000e+00> : vector<16x32xf32>
    %32 = tpu.matmul %4, %31, %cst_30 {dimension_numbers = #tpu.dot_dimension_numbers<[1], [0], [0], [1], [0, 0, 1, 1], [], []>} : vector<16x32xf32>, vector<32x32xf32>, vector<16x32xf32> -> vector<16x32xf32>
    %c2_31 = arith.constant 2 : index
    %c0_32 = arith.constant 0 : index
    %c0_33 = arith.constant 0 : index
    %33 = vector.load %arg5[%c2_31, %c0_32, %c0_33] : memref<3x32x32xf32, #tpu.memory_space<vmem>>, vector<1x32x32xf32>
    %34 = vector.shape_cast %33 : vector<1x32x32xf32> to vector<32x32xf32>
    %cst_34 = arith.constant dense<0.000000e+00> : vector<16x32xf32>
    %35 = tpu.matmul %4, %34, %cst_34 {dimension_numbers = #tpu.dot_dimension_numbers<[1], [0], [0], [1], [0, 0, 1, 1], [], []>} : vector<16x32xf32>, vector<32x32xf32>, vector<16x32xf32> -> vector<16x32xf32>
    %36 = arith.addf %12, %29 : vector<16x32xf32>
    %37 = arith.negf %36 : vector<16x32xf32>
    %38 = math.exp %37 : vector<16x32xf32>
    %cst_35 = arith.constant 1.000000e+00 : f32
    %39 = vector.broadcast %cst_35 : f32 to vector<16x32xf32>
    %40 = arith.addf %39, %38 : vector<16x32xf32>
    %41 = arith.divf %39, %40 : vector<16x32xf32>
    %42 = arith.addf %19, %32 : vector<16x32xf32>
    %43 = arith.negf %42 : vector<16x32xf32>
    %44 = math.exp %43 : vector<16x32xf32>
    %cst_36 = arith.constant 1.000000e+00 : f32
    %45 = vector.broadcast %cst_36 : f32 to vector<16x32xf32>
    %46 = arith.addf %45, %44 : vector<16x32xf32>
    %47 = arith.divf %45, %46 : vector<16x32xf32>
    %c0_37 = arith.constant 0 : index
    %c0_38 = arith.constant 0 : index
    %48 = vector.load %arg6[%c0_37, %c0_38] : memref<1x32xf32, #tpu.memory_space<vmem>>, vector<1x32xf32>
    %49 = vector.broadcast %48 : vector<1x32xf32> to vector<16x32xf32>
    %50 = arith.addf %35, %49 : vector<16x32xf32>
    %51 = arith.mulf %41, %50 : vector<16x32xf32>
    %52 = arith.addf %26, %51 : vector<16x32xf32>
    %53 = math.tanh %52 : vector<16x32xf32>
    %cst_39 = arith.constant 1.000000e+00 : f32
    %54 = vector.broadcast %cst_39 : f32 to vector<16x32xf32>
    %55 = arith.subf %54, %47 : vector<16x32xf32>
    %56 = arith.mulf %55, %53 : vector<16x32xf32>
    %57 = arith.mulf %47, %4 : vector<16x32xf32>
    %58 = arith.addf %56, %57 : vector<16x32xf32>
    %59 = vector.extract_strided_slice %0 {offsets = [0, 1], sizes = [16, 1], strides = [1, 1]} : vector<16x2xf32> to vector<16x1xf32>
    %cst_40 = arith.constant 5.000000e-01 : f32
    %60 = vector.broadcast %cst_40 : f32 to vector<16x1xf32>
    %61 = arith.cmpf ogt, %59, %60 : vector<16x1xf32>
    %62 = vector.shape_cast %61 : vector<16x1xi1> to vector<16x1xi1>
    %63 = vector.broadcast %62 : vector<16x1xi1> to vector<16x32xi1>
    %64 = arith.select %63, %4, %58 : vector<16x32xi1>, vector<16x32xf32>
    %c0_41 = arith.constant 0 : index
    %c0_42 = arith.constant 0 : index
    %65 = vector.load %arg7[%c0_41, %c0_42] : memref<16x32xf32, #tpu.memory_space<vmem>>, vector<16x32xf32>
    tpu.vector_store %arg7[%c0_41, %c0_42], %64 {strides = array<i32>} : memref<16x32xf32, #tpu.memory_space<vmem>>, vector<16x32xf32>,
    return
  }
}

</mosaic_0001>

<llo_original>
// kernel: tpu_custom_call.1
$region0: #{tpu_custom_call.1}
  #allocation0 [shape = 'u32[]', space=smem, size = 0x4, offset = 0x4, fixed_abs, tag = 'smem constant byte address 0x4 - core index']
  #allocation1 [shape = 'u32[144,128]{1,0:T(1,128)}', space=vmem, size = 0x12000, scoped, tag = 'internal scratch']
  %s0 = inlined_call_operand.vmem [shape: f32[16,32], index: 0, kind: input, shape index: {}]
  %s1 = inlined_call_operand.hbm [shape: f32[16,32], index: 1, kind: input, shape index: {}]
  %s2 = inlined_call_operand.vmem [shape: f32[16,2], index: 2, kind: input, shape index: {}]
  %s3 = inlined_call_operand.hbm [shape: f32[3,32,32], index: 3, kind: input, shape index: {}]
  %s4 = inlined_call_operand.vmem [shape: f32[3,1,32], index: 4, kind: input, shape index: {}]
  %s5 = inlined_call_operand.hbm [shape: f32[3,32,32], index: 5, kind: input, shape index: {}]
  %s6 = inlined_call_operand.vmem [shape: f32[1,32], index: 6, kind: input, shape index: {}]
  %s7 = inlined_call_operand.hbm [shape: f32[16,32], index: 7, kind: output, shape index: {}]
  %s8 = sld [smem:[#allocation0]]
  $region50: #{tpu_custom_call.1} parent=0
    _
  %s10 = ssub.s32 1, %s8
  %s11 = scalar_select 0, %s10, %s8
  $region1: #{tpu_custom_call.1} parent=0
    #allocation2 [shape = 'u8[8192]{0}', space=vmem, size = 0x2000, scoped, tag = 'input window, operand 1, single buffered']
    #allocation3 [shape = 's32[1]{0}', space=sflag, size = 0x4, scoped, tag = 'scoped memory for tpu_custom_call.1']
    #allocation4 [shape = 's32[1]{0}', space=sflag, size = 0x4, scoped, tag = 'scoped memory for tpu_custom_call.1']
    #allocation5 [shape = 'u8[49152]{0}', space=vmem, size = 0xc000, scoped, tag = 'input window, operand 3, single buffered']
    #allocation6 [shape = 's32[1]{0}', space=sflag, size = 0x4, scoped, tag = 'scoped memory for tpu_custom_call.1']
    #allocation7 [shape = 'u8[49152]{0}', space=vmem, size = 0xc000, scoped, tag = 'input window, operand 5, single buffered']
    #allocation8 [shape = 'u8[8192]{0}', space=vmem, size = 0x2000, scoped, tag = 'output window, operand 0, single buffered']
    %12 = vsyncpa [#allocation3], 0
    %13 = vsyncpa [#allocation6], 0
    %14 = vsyncpa [#allocation4], 0
    // Predicated region
    $region2: #{tpu_custom_call.1} parent=1 // pred_check
      _
    $region3: #{tpu_custom_call.1} parent=1 // pred_check_branch
      %16 = sbr.rel (0) target = $region5
    $region4: #{tpu_custom_call.1} parent=1 // pred_region
      _
    $region5: #{tpu_custom_call.1} parent=1 // pred_fallthru
      _
    // Predicated region
    $region6: #{tpu_custom_call.1} parent=1 // pred_check
      _
    $region7: #{tpu_custom_call.1} parent=1 // pred_check_branch
      %18 = sbr.rel (0) target = $region9
    $region8: #{tpu_custom_call.1} parent=1 // pred_region
      %s20 = ssub.s32 256, 256
      %21 = vsyncadd [#allocation3], %s20
      %s22 = sshll.u32 [#allocation2], 4
      %s23 = int_to_ptr.vmem [resolvable:$true] %s22
      %28 = dma.hbm_to_vmem [thread:$0]  %s1, 256, %s23, [#allocation3], 128, 128, 8
    $region9: #{tpu_custom_call.1} parent=1 // pred_fallthru
      _
    // Predicated region
    $region10: #{tpu_custom_call.1} parent=1 // pred_check
      _
    $region11: #{tpu_custom_call.1} parent=1 // pred_check_branch
      %30 = sbr.rel (0) target = $region13
    $region12: #{tpu_custom_call.1} parent=1 // pred_region
      _
    $region13: #{tpu_custom_call.1} parent=1 // pred_fallthru
      _
    // Predicated region
    $region14: #{tpu_custom_call.1} parent=1 // pred_check
      _
    $region15: #{tpu_custom_call.1} parent=1 // pred_check_branch
      %32 = sbr.rel (0) target = $region17
    $region16: #{tpu_custom_call.1} parent=1 // pred_region
      %s34 = ssub.s32 1536, 1536
      %35 = vsyncadd [#allocation6], %s34
      %s36 = sshll.u32 [#allocation5], 4
      %s37 = int_to_ptr.vmem [resolvable:$true] %s36
      %42 = dma.hbm_to_vmem [thread:$0]  %s3, 1536, %s37, [#allocation6], 128, 128, 8
    $region17: #{tpu_custom_call.1} parent=1 // pred_fallthru
      _
    // Predicated region
    $region18: #{tpu_custom_call.1} parent=1 // pred_check
      _
    $region19: #{tpu_custom_call.1} parent=1 // pred_check_branch
      %44 = sbr.rel (0) target = $region21
    $region20: #{tpu_custom_call.1} parent=1 // pred_region
      _
    $region21: #{tpu_custom_call.1} parent=1 // pred_fallthru
      _
    // Predicated region
    $region22: #{tpu_custom_call.1} parent=1 // pred_check
      _
    $region23: #{tpu_custom_call.1} parent=1 // pred_check_branch
      %46 = sbr.rel (0) target = $region25
    $region24: #{tpu_custom_call.1} parent=1 // pred_region
      %s48 = ssub.s32 1536, 1536
      %49 = vsyncadd [#allocation6], %s48
      %s50 = sshll.u32 [#allocation7], 4
      %s51 = int_to_ptr.vmem [resolvable:$true] %s50
      %56 = dma.hbm_to_vmem [thread:$0]  %s5, 1536, %s51, [#allocation6], 128, 128, 8
    $region25: #{tpu_custom_call.1} parent=1 // pred_fallthru
      _
    // Predicated region
    $region26: #{tpu_custom_call.1} parent=1 // pred_check
      _
    $region27: #{tpu_custom_call.1} parent=1 // pred_check_branch
      %58 = sbr.rel (0) target = $region29
    $region28: #{tpu_custom_call.1} parent=1 // pred_region
      _
    $region29: #{tpu_custom_call.1} parent=1 // pred_fallthru
      _
    // Predicated region
    $region30: #{tpu_custom_call.1} parent=1 // pred_check
      _
    $region31: #{tpu_custom_call.1} parent=1 // pred_check_branch
      %60 = sbr.rel (0) target = $region33
    $region32: #{tpu_custom_call.1} parent=1 // pred_region
      %61 = dma.done [#allocation3], 256
    $region33: #{tpu_custom_call.1} parent=1 // pred_fallthru
      _
    // Predicated region
    $region34: #{tpu_custom_call.1} parent=1 // pred_check
      _
    $region35: #{tpu_custom_call.1} parent=1 // pred_check_branch
      %63 = sbr.rel (0) target = $region37
    $region36: #{tpu_custom_call.1} parent=1 // pred_region
      %64 = dma.done [#allocation6], 1536
    $region37: #{tpu_custom_call.1} parent=1 // pred_fallthru
      _
    // Predicated region
    $region38: #{tpu_custom_call.1} parent=1 // pred_check
      _
    $region39: #{tpu_custom_call.1} parent=1 // pred_check_branch
      %66 = sbr.rel (0) target = $region41
    $region40: #{tpu_custom_call.1} parent=1 // pred_region
      %67 = dma.done [#allocation6], 1536
    $region41: #{tpu_custom_call.1} parent=1 // pred_fallthru
      _
    %v68 = vld [vmem:[%s2] sm:$0xff]
    %v69 = vld [vmem:[%s2 + $0x8] sm:$0xff]
    %v70 = vld [vmem:[#allocation2] sm:$0xff]
    %v71 = vld [vmem:[#allocation2 + $0x8] sm:$0xff]
    %73 = vset.pattern.permute.xlu0 0
    %74 = vperm.xlu0 %73, %v68
    %v75 = vpop.permute.xlu0 %74
    %78 = vset.pattern.permute.xlu0 0
    %79 = vperm.xlu0 %78, %v69
    %v80 = vpop.permute.xlu0 %79
    %v82 = vmul.f32 %v70, %v75
    %v83 = vmul.f32 %v71, %v80
    %v84 = vld [vmem:[%s0] sm:$0xff]
    %v85 = vld [vmem:[%s0 + $0x8] sm:$0xff]
    %v86 = vld [vmem:[#allocation5] sm:$0xff]
    %v87 = vld [vmem:[#allocation5 + $0x8] sm:$0xff]
    %v88 = vld [vmem:[#allocation5 + $0x10] sm:$0xff]
    %v89 = vld [vmem:[#allocation5 + $0x18] sm:$0xff]
    %v90 = vld [vmem:[%s4] sm:$0x1]
    %v92 = vlaneseq
    %v93 = vshrl.u32 %v92, 7
    %v94 = vsub.s32 0, %v93
    %v95 = vrot.slane %v90, %v94
    %vm97 = vcmask 261120
    %v99 = vsel %vm97, %v84, 0
    %v102 = vsel %vm97, %v85, 0
    %104 = vmatprep.subr.mxu0 0.0
    %105 = vmatpush1.msra.mxu0 %v86
    %106 = vmatprep.subr.mxu0 0.0
    %107 = vmatpush1.msra.mxu0 %v87
    %108 = vmatprep.subr.mxu0 0.0
    %109 = vmatpush1.msra.mxu0 %v88
    %110 = vmatprep.subr.mxu0 0.0
    %111 = vmatpush1.msra.mxu0 %v89
    %112 = vmatprep.subr.mxu0 0.0
    %113 = vmatpush1.msra.mxu0 0.0
    %114 = vmatprep.subr.mxu0 0.0
    %115 = vmatpush1.msra.mxu0 0.0
    %116 = vmatprep.subr.mxu0 0.0
    %117 = vmatpush1.msra.mxu0 0.0
    %118 = vmatprep.subr.mxu0 0.0
    %119 = vmatpush1.msra.mxu0 0.0
    %120 = vmatprep.subr.mxu0 0.0
    %121 = vmatpush1.msra.mxu0 0.0
    %122 = vmatprep.subr.mxu0 0.0
    %123 = vmatpush1.msra.mxu0 0.0
    %124 = vmatprep.subr.mxu0 0.0
    %125 = vmatpush1.msra.mxu0 0.0
    %126 = vmatprep.subr.mxu0 0.0
    %127 = vmatpush1.msra.mxu0 0.0
    %128 = vmatprep.subr.mxu0 0.0
    %129 = vmatpush1.msra.mxu0 0.0
    %130 = vmatprep.subr.mxu0 0.0
    %131 = vmatpush1.msra.mxu0 0.0
    %132 = vmatprep.subr.mxu0 0.0
    %133 = vmatpush1.msra.mxu0 0.0
    %134 = vmatprep.subr.mxu0 0.0
    %135 = vmatpush1.msra.mxu0 0.0
    %136 = vmatprep.subr.mxu0 0.0
    %137 = vmatpush1.msra.mxu0 0.0
    %138 = vmatprep.subr.mxu0 0.0
    %139 = vmatpush1.msra.mxu0 0.0
    %140 = vmatprep.subr.mxu0 0.0
    %141 = vmatpush1.msra.mxu0 0.0
    %142 = vmatprep.subr.mxu0 0.0
    %143 = vmatpush1.msra.mxu0 0.0
    %144 = vmatprep.subr.mxu0 0.0
    %145 = vmatpush1.msra.mxu0 0.0
    %146 = vmatprep.subr.mxu0 0.0
    %147 = vmatpush1.msra.mxu0 0.0
    %148 = vmatprep.subr.mxu0 0.0
    %149 = vmatpush1.msra.mxu0 0.0
    %150 = vmatprep.subr.mxu0 0.0
    %151 = vmatpush1.msra.mxu0 0.0
    %152 = vmatprep.subr.mxu0 0.0
    %153 = vmatpush1.msra.mxu0 0.0
    %154 = vmatprep.subr.mxu0 0.0
    %155 = vmatpush1.msra.mxu0 0.0
    %156 = vmatprep.subr.mxu0 0.0
    %157 = vmatpush1.msra.mxu0 0.0
    %158 = vmatprep.subr.mxu0 0.0
    %159 = vmatpush1.msra.mxu0 0.0
    %160 = vmatprep.subr.mxu0 0.0
    %161 = vmatpush1.msra.mxu0 0.0
    %162 = vmatprep.subr.mxu0 0.0
    %163 = vmatpush1.msra.mxu0 0.0
    %164 = vmatprep.subr.mxu0 0.0
    %165 = vmatpush1.msra.mxu0 0.0
    %166 = vmatprep.subr.mxu0 0.0
    %167 = vmatpush1.msra.mxu0 0.0
    %168 = vmatprep.mubr.f32.mxu0 0.0
    %169 = vmatmul.mubr.f32.gmra.mrb[0].mxu0 %v99
    %v170 = vpop.f32.mrb[0].mxu0
    %v171 = vadd.f32 %v95, %v170
    %v172 = vpop.f32.mrb[0].mxu0
    %173 = vmatprep.mubr.f32.mxu0 0.0
    %174 = vmatmul.mubr.f32.gmra.mrb[0].mxu0 %v102
    %v175 = vpop.f32.mrb[0].mxu0
    %v176 = vadd.f32 %v95, %v175
    %v177 = vpop.f32.mrb[0].mxu0
    %178 = vdwg.mxu0
    %s179 = scalar_lea.vmem [#allocation5], 32
    %v180 = vld [vmem:[%s179] sm:$0xff]
    %v181 = vld [vmem:[%s179 + $0x8] sm:$0xff]
    %v182 = vld [vmem:[%s179 + $0x10] sm:$0xff]
    %v183 = vld [vmem:[%s179 + $0x18] sm:$0xff]
    %s184 = scalar_lea.vmem %s4, 1
    %v185 = vld [vmem:[%s184] sm:$0x1]
    %v187 = vlaneseq
    %v188 = vshrl.u32 %v187, 7
    %v189 = vsub.s32 0, %v188
    %v190 = vrot.slane %v185, %v189
    %192 = vmatprep.subr.mxu0 0.0
    %193 = vmatpush1.msra.mxu0 %v180
    %194 = vmatprep.subr.mxu0 0.0
    %195 = vmatpush1.msra.mxu0 %v181
    %196 = vmatprep.subr.mxu0 0.0
    %197 = vmatpush1.msra.mxu0 %v182
    %198 = vmatprep.subr.mxu0 0.0
    %199 = vmatpush1.msra.mxu0 %v183
    %200 = vmatprep.subr.mxu0 0.0
    %201 = vmatpush1.msra.mxu0 0.0
    %202 = vmatprep.subr.mxu0 0.0
    %203 = vmatpush1.msra.mxu0 0.0
    %204 = vmatprep.subr.mxu0 0.0
    %205 = vmatpush1.msra.mxu0 0.0
    %206 = vmatprep.subr.mxu0 0.0
    %207 = vmatpush1.msra.mxu0 0.0
    %208 = vmatprep.subr.mxu0 0.0
    %209 = vmatpush1.msra.mxu0 0.0
    %210 = vmatprep.subr.mxu0 0.0
    %211 = vmatpush1.msra.mxu0 0.0
    %212 = vmatprep.subr.mxu0 0.0
    %213 = vmatpush1.msra.mxu0 0.0
    %214 = vmatprep.subr.mxu0 0.0
    %215 = vmatpush1.msra.mxu0 0.0
    %216 = vmatprep.subr.mxu0 0.0
    %217 = vmatpush1.msra.mxu0 0.0
    %218 = vmatprep.subr.mxu0 0.0
    %219 = vmatpush1.msra.mxu0 0.0
    %220 = vmatprep.subr.mxu0 0.0
    %221 = vmatpush1.msra.mxu0 0.0
    %222 = vmatprep.subr.mxu0 0.0
    %223 = vmatpush1.msra.mxu0 0.0
    %224 = vmatprep.subr.mxu0 0.0
    %225 = vmatpush1.msra.mxu0 0.0
    %226 = vmatprep.subr.mxu0 0.0
    %227 = vmatpush1.msra.mxu0 0.0
    %228 = vmatprep.subr.mxu0 0.0
    %229 = vmatpush1.msra.mxu0 0.0
    %230 = vmatprep.subr.mxu0 0.0
    %231 = vmatpush1.msra.mxu0 0.0
    %232 = vmatprep.subr.mxu0 0.0
    %233 = vmatpush1.msra.mxu0 0.0
    %234 = vmatprep.subr.mxu0 0.0
    %235 = vmatpush1.msra.mxu0 0.0
    %236 = vmatprep.subr.mxu0 0.0
    %237 = vmatpush1.msra.mxu0 0.0
    %238 = vmatprep.subr.mxu0 0.0
    %239 = vmatpush1.msra.mxu0 0.0
    %240 = vmatprep.subr.mxu0 0.0
    %241 = vmatpush1.msra.mxu0 0.0
    %242 = vmatprep.subr.mxu0 0.0
    %243 = vmatpush1.msra.mxu0 0.0
    %244 = vmatprep.subr.mxu0 0.0
    %245 = vmatpush1.msra.mxu0 0.0
    %246 = vmatprep.subr.mxu0 0.0
    %247 = vmatpush1.msra.mxu0 0.0
    %248 = vmatprep.subr.mxu0 0.0
    %249 = vmatpush1.msra.mxu0 0.0
    %250 = vmatprep.subr.mxu0 0.0
    %251 = vmatpush1.msra.mxu0 0.0
    %252 = vmatprep.subr.mxu0 0.0
    %253 = vmatpush1.msra.mxu0 0.0
    %254 = vmatprep.subr.mxu0 0.0
    %255 = vmatpush1.msra.mxu0 0.0
    %256 = vmatprep.mubr.f32.mxu0 0.0
    %257 = vmatmul.mubr.f32.gmra.mrb[0].mxu0 %v99
    %v258 = vpop.f32.mrb[0].mxu0
    %v259 = vadd.f32 %v190, %v258
    %v260 = vpop.f32.mrb[0].mxu0
    %261 = vmatprep.mubr.f32.mxu0 0.0
    %262 = vmatmul.mubr.f32.gmra.mrb[0].mxu0 %v102
    %v263 = vpop.f32.mrb[0].mxu0
    %v264 = vadd.f32 %v190, %v263
    %v265 = vpop.f32.mrb[0].mxu0
    %266 = vdwg.mxu0
    %s267 = scalar_lea.vmem [#allocation5], 64
    %v268 = vld [vmem:[%s267] sm:$0xff]
    %v269 = vld [vmem:[%s267 + $0x8] sm:$0xff]
    %v270 = vld [vmem:[%s267 + $0x10] sm:$0xff]
    %v271 = vld [vmem:[%s267 + $0x18] sm:$0xff]
    %s272 = scalar_lea.vmem %s4, 2
    %v273 = vld [vmem:[%s272] sm:$0x1]
    %v275 = vlaneseq
    %v276 = vshrl.u32 %v275, 7
    %v277 = vsub.s32 0, %v276
    %v278 = vrot.slane %v273, %v277
    %280 = vmatprep.subr.mxu0 0.0
    %281 = vmatpush1.msra.mxu0 %v268
    %282 = vmatprep.subr.mxu0 0.0
    %283 = vmatpush1.msra.mxu0 %v269
    %284 = vmatprep.subr.mxu0 0.0
    %285 = vmatpush1.msra.mxu0 %v270
    %286 = vmatprep.subr.mxu0 0.0
    %287 = vmatpush1.msra.mxu0 %v271
    %288 = vmatprep.subr.mxu0 0.0
    %289 = vmatpush1.msra.mxu0 0.0
    %290 = vmatprep.subr.mxu0 0.0
    %291 = vmatpush1.msra.mxu0 0.0
    %292 = vmatprep.subr.mxu0 0.0
    %293 = vmatpush1.msra.mxu0 0.0
    %294 = vmatprep.subr.mxu0 0.0
    %295 = vmatpush1.msra.mxu0 0.0
    %296 = vmatprep.subr.mxu0 0.0
    %297 = vmatpush1.msra.mxu0 0.0
    %298 = vmatprep.subr.mxu0 0.0
    %299 = vmatpush1.msra.mxu0 0.0
    %300 = vmatprep.subr.mxu0 0.0
    %301 = vmatpush1.msra.mxu0 0.0
    %302 = vmatprep.subr.mxu0 0.0
    %303 = vmatpush1.msra.mxu0 0.0
    %304 = vmatprep.subr.mxu0 0.0
    %305 = vmatpush1.msra.mxu0 0.0
    %306 = vmatprep.subr.mxu0 0.0
    %307 = vmatpush1.msra.mxu0 0.0
    %308 = vmatprep.subr.mxu0 0.0
    %309 = vmatpush1.msra.mxu0 0.0
    %310 = vmatprep.subr.mxu0 0.0
    %311 = vmatpush1.msra.mxu0 0.0
    %312 = vmatprep.subr.mxu0 0.0
    %313 = vmatpush1.msra.mxu0 0.0
    %314 = vmatprep.subr.mxu0 0.0
    %315 = vmatpush1.msra.mxu0 0.0
    %316 = vmatprep.subr.mxu0 0.0
    %317 = vmatpush1.msra.mxu0 0.0
    %318 = vmatprep.subr.mxu0 0.0
    %319 = vmatpush1.msra.mxu0 0.0
    %320 = vmatprep.subr.mxu0 0.0
    %321 = vmatpush1.msra.mxu0 0.0
    %322 = vmatprep.subr.mxu0 0.0
    %323 = vmatpush1.msra.mxu0 0.0
    %324 = vmatprep.subr.mxu0 0.0
    %325 = vmatpush1.msra.mxu0 0.0
    %326 = vmatprep.subr.mxu0 0.0
    %327 = vmatpush1.msra.mxu0 0.0
    %328 = vmatprep.subr.mxu0 0.0
    %329 = vmatpush1.msra.mxu0 0.0
    %330 = vmatprep.subr.mxu0 0.0
    %331 = vmatpush1.msra.mxu0 0.0
    %332 = vmatprep.subr.mxu0 0.0
    %333 = vmatpush1.msra.mxu0 0.0
    %334 = vmatprep.subr.mxu0 0.0
    %335 = vmatpush1.msra.mxu0 0.0
    %336 = vmatprep.subr.mxu0 0.0
    %337 = vmatpush1.msra.mxu0 0.0
    %338 = vmatprep.subr.mxu0 0.0
    %339 = vmatpush1.msra.mxu0 0.0
    %340 = vmatprep.subr.mxu0 0.0
    %341 = vmatpush1.msra.mxu0 0.0
    %342 = vmatprep.subr.mxu0 0.0
    %343 = vmatpush1.msra.mxu0 0.0
    %344 = vmatprep.mubr.f32.mxu0 0.0
    %345 = vmatmul.mubr.f32.gmra.mrb[0].mxu0 %v99
    %v346 = vpop.f32.mrb[0].mxu0
    %v347 = vadd.f32 %v278, %v346
    %v348 = vpop.f32.mrb[0].mxu0
    %349 = vmatprep.mubr.f32.mxu0 0.0
    %350 = vmatmul.mubr.f32.gmra.mrb[0].mxu0 %v102
    %v351 = vpop.f32.mrb[0].mxu0
    %v352 = vadd.f32 %v278, %v351
    %v353 = vpop.f32.mrb[0].mxu0
    %354 = vdwg.mxu0
    %v355 = vld [vmem:[#allocation7] sm:$0xff]
    %v356 = vld [vmem:[#allocation7 + $0x8] sm:$0xff]
    %v357 = vld [vmem:[#allocation7 + $0x10] sm:$0xff]
    %v358 = vld [vmem:[#allocation7 + $0x18] sm:$0xff]
    %v360 = vsel %vm97, %v82, 0
    %v363 = vsel %vm97, %v83, 0
    %365 = vmatprep.subr.mxu0 0.0
    %366 = vmatpush1.msra.mxu0 %v355
    %367 = vmatprep.subr.mxu0 0.0
    %368 = vmatpush1.msra.mxu0 %v356
    %369 = vmatprep.subr.mxu0 0.0
    %370 = vmatpush1.msra.mxu0 %v357
    %371 = vmatprep.subr.mxu0 0.0
    %372 = vmatpush1.msra.mxu0 %v358
    %373 = vmatprep.subr.mxu0 0.0
    %374 = vmatpush1.msra.mxu0 0.0
    %375 = vmatprep.subr.mxu0 0.0
    %376 = vmatpush1.msra.mxu0 0.0
    %377 = vmatprep.subr.mxu0 0.0
    %378 = vmatpush1.msra.mxu0 0.0
    %379 = vmatprep.subr.mxu0 0.0
    %380 = vmatpush1.msra.mxu0 0.0
    %381 = vmatprep.subr.mxu0 0.0
    %382 = vmatpush1.msra.mxu0 0.0
    %383 = vmatprep.subr.mxu0 0.0
    %384 = vmatpush1.msra.mxu0 0.0
    %385 = vmatprep.subr.mxu0 0.0
    %386 = vmatpush1.msra.mxu0 0.0
    %387 = vmatprep.subr.mxu0 0.0
    %388 = vmatpush1.msra.mxu0 0.0
    %389 = vmatprep.subr.mxu0 0.0
    %390 = vmatpush1.msra.mxu0 0.0
    %391 = vmatprep.subr.mxu0 0.0
    %392 = vmatpush1.msra.mxu0 0.0
    %393 = vmatprep.subr.mxu0 0.0
    %394 = vmatpush1.msra.mxu0 0.0
    %395 = vmatprep.subr.mxu0 0.0
    %396 = vmatpush1.msra.mxu0 0.0
    %397 = vmatprep.subr.mxu0 0.0
    %398 = vmatpush1.msra.mxu0 0.0
    %399 = vmatprep.subr.mxu0 0.0
    %400 = vmatpush1.msra.mxu0 0.0
    %401 = vmatprep.subr.mxu0 0.0
    %402 = vmatpush1.msra.mxu0 0.0
    %403 = vmatprep.subr.mxu0 0.0
    %404 = vmatpush1.msra.mxu0 0.0
    %405 = vmatprep.subr.mxu0 0.0
    %406 = vmatpush1.msra.mxu0 0.0
    %407 = vmatprep.subr.mxu0 0.0
    %408 = vmatpush1.msra.mxu0 0.0
    %409 = vmatprep.subr.mxu0 0.0
    %410 = vmatpush1.msra.mxu0 0.0
    %411 = vmatprep.subr.mxu0 0.0
    %412 = vmatpush1.msra.mxu0 0.0
    %413 = vmatprep.subr.mxu0 0.0
    %414 = vmatpush1.msra.mxu0 0.0
    %415 = vmatprep.subr.mxu0 0.0
    %416 = vmatpush1.msra.mxu0 0.0
    %417 = vmatprep.subr.mxu0 0.0
    %418 = vmatpush1.msra.mxu0 0.0
    %419 = vmatprep.subr.mxu0 0.0
    %420 = vmatpush1.msra.mxu0 0.0
    %421 = vmatprep.subr.mxu0 0.0
    %422 = vmatpush1.msra.mxu0 0.0
    %423 = vmatprep.subr.mxu0 0.0
    %424 = vmatpush1.msra.mxu0 0.0
    %425 = vmatprep.subr.mxu0 0.0
    %426 = vmatpush1.msra.mxu0 0.0
    %427 = vmatprep.subr.mxu0 0.0
    %428 = vmatpush1.msra.mxu0 0.0
    %429 = vmatprep.mubr.f32.mxu0 0.0
    %430 = vmatmul.mubr.f32.gmra.mrb[0].mxu0 %v360
    %v431 = vpop.f32.mrb[0].mxu0
    %v432 = vadd.f32 0.0, %v431
    %v433 = vpop.f32.mrb[0].mxu0
    %434 = vmatprep.mubr.f32.mxu0 0.0
    %435 = vmatmul.mubr.f32.gmra.mrb[0].mxu0 %v363
    %v436 = vpop.f32.mrb[0].mxu0
    %v437 = vadd.f32 0.0, %v436
    %v438 = vpop.f32.mrb[0].mxu0
    %439 = vdwg.mxu0
    %s440 = scalar_lea.vmem [#allocation7], 32
    %v441 = vld [vmem:[%s440] sm:$0xff]
    %v442 = vld [vmem:[%s440 + $0x8] sm:$0xff]
    %v443 = vld [vmem:[%s440 + $0x10] sm:$0xff]
    %v444 = vld [vmem:[%s440 + $0x18] sm:$0xff]
    %445 = vmatprep.subr.mxu0 0.0
    %446 = vmatpush1.msra.mxu0 %v441
    %447 = vmatprep.subr.mxu0 0.0
    %448 = vmatpush1.msra.mxu0 %v442
    %449 = vmatprep.subr.mxu0 0.0
    %450 = vmatpush1.msra.mxu0 %v443
    %451 = vmatprep.subr.mxu0 0.0
    %452 = vmatpush1.msra.mxu0 %v444
    %453 = vmatprep.subr.mxu0 0.0
    %454 = vmatpush1.msra.mxu0 0.0
    %455 = vmatprep.subr.mxu0 0.0
    %456 = vmatpush1.msra.mxu0 0.0
    %457 = vmatprep.subr.mxu0 0.0
    %458 = vmatpush1.msra.mxu0 0.0
    %459 = vmatprep.subr.mxu0 0.0
    %460 = vmatpush1.msra.mxu0 0.0
    %461 = vmatprep.subr.mxu0 0.0
    %462 = vmatpush1.msra.mxu0 0.0
    %463 = vmatprep.subr.mxu0 0.0
    %464 = vmatpush1.msra.mxu0 0.0
    %465 = vmatprep.subr.mxu0 0.0
    %466 = vmatpush1.msra.mxu0 0.0
    %467 = vmatprep.subr.mxu0 0.0
    %468 = vmatpush1.msra.mxu0 0.0
    %469 = vmatprep.subr.mxu0 0.0
    %470 = vmatpush1.msra.mxu0 0.0
    %471 = vmatprep.subr.mxu0 0.0
    %472 = vmatpush1.msra.mxu0 0.0
    %473 = vmatprep.subr.mxu0 0.0
    %474 = vmatpush1.msra.mxu0 0.0
    %475 = vmatprep.subr.mxu0 0.0
    %476 = vmatpush1.msra.mxu0 0.0
    %477 = vmatprep.subr.mxu0 0.0
    %478 = vmatpush1.msra.mxu0 0.0
    %479 = vmatprep.subr.mxu0 0.0
    %480 = vmatpush1.msra.mxu0 0.0
    %481 = vmatprep.subr.mxu0 0.0
    %482 = vmatpush1.msra.mxu0 0.0
    %483 = vmatprep.subr.mxu0 0.0
    %484 = vmatpush1.msra.mxu0 0.0
    %485 = vmatprep.subr.mxu0 0.0
    %486 = vmatpush1.msra.mxu0 0.0
    %487 = vmatprep.subr.mxu0 0.0
    %488 = vmatpush1.msra.mxu0 0.0
    %489 = vmatprep.subr.mxu0 0.0
    %490 = vmatpush1.msra.mxu0 0.0
    %491 = vmatprep.subr.mxu0 0.0
    %492 = vmatpush1.msra.mxu0 0.0
    %493 = vmatprep.subr.mxu0 0.0
    %494 = vmatpush1.msra.mxu0 0.0
    %495 = vmatprep.subr.mxu0 0.0
    %496 = vmatpush1.msra.mxu0 0.0
    %497 = vmatprep.subr.mxu0 0.0
    %498 = vmatpush1.msra.mxu0 0.0
    %499 = vmatprep.subr.mxu0 0.0
    %500 = vmatpush1.msra.mxu0 0.0
    %501 = vmatprep.subr.mxu0 0.0
    %502 = vmatpush1.msra.mxu0 0.0
    %503 = vmatprep.subr.mxu0 0.0
    %504 = vmatpush1.msra.mxu0 0.0
    %505 = vmatprep.subr.mxu0 0.0
    %506 = vmatpush1.msra.mxu0 0.0
    %507 = vmatprep.subr.mxu0 0.0
    %508 = vmatpush1.msra.mxu0 0.0
    %509 = vmatprep.mubr.f32.mxu0 0.0
    %510 = vmatmul.mubr.f32.gmra.mrb[0].mxu0 %v360
    %v511 = vpop.f32.mrb[0].mxu0
    %v512 = vadd.f32 0.0, %v511
    %v513 = vpop.f32.mrb[0].mxu0
    %514 = vmatprep.mubr.f32.mxu0 0.0
    %515 = vmatmul.mubr.f32.gmra.mrb[0].mxu0 %v363
    %v516 = vpop.f32.mrb[0].mxu0
    %v517 = vadd.f32 0.0, %v516
    %v518 = vpop.f32.mrb[0].mxu0
    %519 = vdwg.mxu0
    %s520 = scalar_lea.vmem [#allocation7], 64
    %v521 = vld [vmem:[%s520] sm:$0xff]
    %v522 = vld [vmem:[%s520 + $0x8] sm:$0xff]
    %v523 = vld [vmem:[%s520 + $0x10] sm:$0xff]
    %v524 = vld [vmem:[%s520 + $0x18] sm:$0xff]
    %v525 = vadd.f32 %v171, %v432
    %v526 = vadd.f32 %v176, %v437
    %v527 = vxor.u32 %v525, 2147483648
    %v528 = vxor.u32 %v526, 2147483648
    %v529 = vmul.f32 %v527, 1.442695
    %v530 = vpow.pop %v529
    %v531 = vmul.f32 %v528, 1.442695
    %v532 = vpow.pop %v531
    %v533 = vadd.f32 %v530, 1.0
    %v534 = vadd.f32 %v532, 1.0
    %v535 = vrcp.pop %v533
    %v536 = vmul.f32 1.0, %v535
    %v537 = vrcp.pop %v534
    %v538 = vmul.f32 1.0, %v537
    %v539 = vadd.f32 %v259, %v512
    %v540 = vadd.f32 %v264, %v517
    %v541 = vxor.u32 %v539, 2147483648
    %v542 = vxor.u32 %v540, 2147483648
    %v543 = vmul.f32 %v541, 1.442695
    %v544 = vpow.pop %v543
    %v545 = vmul.f32 %v542, 1.442695
    %v546 = vpow.pop %v545
    %v547 = vadd.f32 %v544, 1.0
    %v548 = vadd.f32 %v546, 1.0
    %v549 = vrcp.pop %v547
    %v550 = vmul.f32 1.0, %v549
    %v551 = vrcp.pop %v548
    %v552 = vmul.f32 1.0, %v551
    %v553 = vld [vmem:[%s6] sm:$0x1]
    %v555 = vlaneseq
    %v556 = vshrl.u32 %v555, 7
    %v557 = vsub.s32 0, %v556
    %v558 = vrot.slane %v553, %v557
    %560 = vmatprep.subr.mxu0 0.0
    %561 = vmatpush1.msra.mxu0 %v521
    %562 = vmatprep.subr.mxu0 0.0
    %563 = vmatpush1.msra.mxu0 %v522
    %564 = vmatprep.subr.mxu0 0.0
    %565 = vmatpush1.msra.mxu0 %v523
    %566 = vmatprep.subr.mxu0 0.0
    %567 = vmatpush1.msra.mxu0 %v524
    %568 = vmatprep.subr.mxu0 0.0
    %569 = vmatpush1.msra.mxu0 0.0
    %570 = vmatprep.subr.mxu0 0.0
    %571 = vmatpush1.msra.mxu0 0.0
    %572 = vmatprep.subr.mxu0 0.0
    %573 = vmatpush1.msra.mxu0 0.0
    %574 = vmatprep.subr.mxu0 0.0
    %575 = vmatpush1.msra.mxu0 0.0
    %576 = vmatprep.subr.mxu0 0.0
    %577 = vmatpush1.msra.mxu0 0.0
    %578 = vmatprep.subr.mxu0 0.0
    %579 = vmatpush1.msra.mxu0 0.0
    %580 = vmatprep.subr.mxu0 0.0
    %581 = vmatpush1.msra.mxu0 0.0
    %582 = vmatprep.subr.mxu0 0.0
    %583 = vmatpush1.msra.mxu0 0.0
    %584 = vmatprep.subr.mxu0 0.0
    %585 = vmatpush1.msra.mxu0 0.0
    %586 = vmatprep.subr.mxu0 0.0
    %587 = vmatpush1.msra.mxu0 0.0
    %588 = vmatprep.subr.mxu0 0.0
    %589 = vmatpush1.msra.mxu0 0.0
    %590 = vmatprep.subr.mxu0 0.0
    %591 = vmatpush1.msra.mxu0 0.0
    %592 = vmatprep.subr.mxu0 0.0
    %593 = vmatpush1.msra.mxu0 0.0
    %594 = vmatprep.subr.mxu0 0.0
    %595 = vmatpush1.msra.mxu0 0.0
    %596 = vmatprep.subr.mxu0 0.0
    %597 = vmatpush1.msra.mxu0 0.0
    %598 = vmatprep.subr.mxu0 0.0
    %599 = vmatpush1.msra.mxu0 0.0
    %600 = vmatprep.subr.mxu0 0.0
    %601 = vmatpush1.msra.mxu0 0.0
    %602 = vmatprep.subr.mxu0 0.0
    %603 = vmatpush1.msra.mxu0 0.0
    %604 = vmatprep.subr.mxu0 0.0
    %605 = vmatpush1.msra.mxu0 0.0
    %606 = vmatprep.subr.mxu0 0.0
    %607 = vmatpush1.msra.mxu0 0.0
    %608 = vmatprep.subr.mxu0 0.0
    %609 = vmatpush1.msra.mxu0 0.0
    %610 = vmatprep.subr.mxu0 0.0
    %611 = vmatpush1.msra.mxu0 0.0
    %612 = vmatprep.subr.mxu0 0.0
    %613 = vmatpush1.msra.mxu0 0.0
    %614 = vmatprep.subr.mxu0 0.0
    %615 = vmatpush1.msra.mxu0 0.0
    %616 = vmatprep.subr.mxu0 0.0
    %617 = vmatpush1.msra.mxu0 0.0
    %618 = vmatprep.subr.mxu0 0.0
    %619 = vmatpush1.msra.mxu0 0.0
    %620 = vmatprep.subr.mxu0 0.0
    %621 = vmatpush1.msra.mxu0 0.0
    %622 = vmatprep.subr.mxu0 0.0
    %623 = vmatpush1.msra.mxu0 0.0
    %624 = vmatprep.mubr.f32.mxu0 0.0
    %625 = vmatmul.mubr.f32.gmra.mrb[0].mxu0 %v360
    %v626 = vpop.f32.mrb[0].mxu0
    %v627 = vadd.f32 %v558, %v626
    %v628 = vpop.f32.mrb[0].mxu0
    %629 = vmatprep.mubr.f32.mxu0 0.0
    %630 = vmatmul.mubr.f32.gmra.mrb[0].mxu0 %v363
    %v631 = vpop.f32.mrb[0].mxu0
    %v632 = vadd.f32 %v558, %v631
    %v633 = vpop.f32.mrb[0].mxu0
    %634 = vdwg.mxu0
    %v635 = vmul.f32 %v536, %v627
    %v636 = vmul.f32 %v538, %v632
    %v637 = vadd.f32 %v347, %v635
    %v638 = vadd.f32 %v352, %v636
    %v639 = vtanh.pop %v637
    %v640 = vtanh.pop %v638
    %v641 = vsub.f32 1.0, %v550
    %v642 = vsub.f32 1.0, %v552
    %v643 = vmul.f32 %v641, %v639
    %v644 = vmul.f32 %v642, %v640
    %v645 = vmul.f32 %v550, %v82
    %v646 = vmul.f32 %v552, %v83
    %v647 = vadd.f32 %v643, %v645
    %v648 = vadd.f32 %v644, %v646
    %vm649 = vcmp.gt.f32.partialorder %v68, 0.5
    %vm650 = vcmp.gt.f32.partialorder %v69, 0.5
    %v651 = vsel %vm649, 1, 0
    %v652 = vsel %vm650, 1, 0
    %653 = vset.pattern.permute.xlu0 1
    %654 = vperm.xlu0 %653, %v651
    %v655 = vpop.permute.xlu0 %654
    %656 = vset.pattern.permute.xlu0 1
    %657 = vperm.xlu0 %656, %v652
    %v658 = vpop.permute.xlu0 %657
    %vm659 = vcmp.eq.s32.totalorder %v655, 1
    %vm660 = vcmp.eq.s32.totalorder %v658, 1
    %v661 = vsel %vm659, %v82, %v647
    %v662 = vsel %vm660, %v83, %v648
    %663 = vst.msk [vmem:[#allocation8] sm:$0xff] %vm97, %v661
    %664 = vst.msk [vmem:[#allocation8 + $0x8] sm:$0xff] %vm97, %v662
    // Predicated region
    $region42: #{tpu_custom_call.1} parent=1 // pred_check
      _
    $region43: #{tpu_custom_call.1} parent=1 // pred_check_branch
      %666 = sbr.rel (0) target = $region45
    $region44: #{tpu_custom_call.1} parent=1 // pred_region
      %s668 = ssub.s32 256, 256
      %669 = vsyncadd [#allocation4], %s668
      %s670 = sshll.u32 [#allocation8], 4
      %s671 = int_to_ptr.vmem [resolvable:$true] %s670
      %676 = dma.vmem_to_hbm [thread:$0]  %s671, 256, %s7, [#allocation4], 128, 128, 8
    $region45: #{tpu_custom_call.1} parent=1 // pred_fallthru
      _
    // Predicated region
    $region46: #{tpu_custom_call.1} parent=1 // pred_check
      _
    $region47: #{tpu_custom_call.1} parent=1 // pred_check_branch
      %678 = sbr.rel (0) target = $region49
    $region48: #{tpu_custom_call.1} parent=1 // pred_region
      %679 = dma.done [#allocation4], 256
    $region49: #{tpu_custom_call.1} parent=1 // pred_fallthru
      _
    %680 = vsyncpa [#allocation3], 1
    %681 = vsyncpa [#allocation6], 1
    %682 = vsyncpa [#allocation4], 1

</llo_original>
